<compile_context>
chip_gen: v6e
topology: v6e:2x2x1
jax: 0.10.0
libtpu: 0.0.40
codegen_flags: <defaults>
</compile_context>

<pallas_src>
import jax
import jax.numpy as jnp
from jax.experimental import pallas as pl
from jax.experimental.pallas import tpu as pltpu


_LANE_WIDTH_CANDIDATES = (8192, 4096, 2048, 1024, 512, 256, 128)
_BLOCK_BYTES = 2 * 1024 * 1024  # ~2 MiB/block: 4 live buffers (dbl-buffered in+out) = 8 MiB,
                                # comfortably under the default scoped VMEM on v5e/v6e/v7x.


def _neck_identity_kernel(x_ref, o_ref):
    # TODO(synk): NECK.forward is NotImplementedError in the reference module;
    # base-class semantics are a pure pass-through of the batch features.
    o_ref[...] = x_ref[...]


def _pallas_passthrough(x):
    """Lane-dense identity carry of `x` through the device (base NECK pass-through)."""
    total = x.size
    itemsize = x.dtype.itemsize
    total_bytes = total * itemsize

    # Flatten to a lane-dense 2D slab: last dim a large multiple of 128.
    width = None
    for cand in _LANE_WIDTH_CANDIDATES:
        if total % cand == 0:
            width = cand
            break
    if width is None:
        # Odd/tiny total: fall back to a single full-array block (exempt from
        # the (8,128) divisibility rule because the block equals the array).
        width = total
    rows = total // width
    x2 = x.reshape(rows, width)

    cost = pl.CostEstimate(flops=0, transcendentals=0, bytes_accessed=2 * total_bytes)

    if total_bytes <= _BLOCK_BYTES:
        # Whole array in one block: exactly one DMA in and one DMA out.
        grid = (1,)
        block = (rows, width)
        index_map = lambda i: (0, 0)
    else:
        # Multi-MiB row tiles; block dims stay multiples of (8, 128).
        budget_rows = max(8, ((_BLOCK_BYTES // (width * itemsize)) // 8) * 8)
        block_rows = min(budget_rows, rows)
        grid = (pl.cdiv(rows, block_rows),)
        block = (block_rows, width)
        index_map = lambda i: (i, 0)

    out = pl.pallas_call(
        _neck_identity_kernel,
        out_shape=jax.ShapeDtypeStruct((rows, width), x.dtype),
        grid_spec=pltpu.PrefetchScalarGridSpec(
            num_scalar_prefetch=0,
            grid=grid,
            in_specs=[pl.BlockSpec(block, index_map)],
            out_specs=pl.BlockSpec(block, index_map),
        ),
        # Pure identity: alias input buffer to output so no second HBM buffer
        # is allocated for the result.
        input_output_aliases={0: 0},
        cost_estimate=cost,
        compiler_params=pltpu.CompilerParams(
            dimension_semantics=("parallel",),  # free 2x on v7x (2 TCs); no-op on v5e/v6e
        ),
    )(x2)

    return out.reshape(x.shape)


class NECK:
    """JAX/Pallas counterpart of the PyTorch NECK base module."""

    def __init__(self, model_info_dict):
        self.model_info_dict = model_info_dict

    def forward(self, batch_dict):
        x = batch_dict["spatial_features"]  # NCHW, like the PyTorch conv convention
        out = _pallas_passthrough(x)
        batch_dict = dict(batch_dict)
        batch_dict["neck_features"] = out
        return batch_dict


if __name__ == "__main__":
    key = jax.random.PRNGKey(0)
    x = jax.random.normal(key, (2, 4, 16, 16), dtype=jnp.float32)  # NCHW

    neck = NECK(model_info_dict={"in_channels": 4})
    out_dict = neck.forward({"spatial_features": x})
    y = jax.block_until_ready(out_dict["neck_features"])

    assert y.shape == x.shape
    assert bool(jnp.allclose(y, x))
    print("KERNEL_OK")
</pallas_src>

<mosaic_0001>
module attributes {stable_mosaic.version = 11 : i64} {
  func.func @_neck_identity_kernel(%arg0: i32, %arg1: memref<1x2048xf32, #tpu.memory_space<vmem>>, %arg2: memref<1x2048xf32, #tpu.memory_space<vmem>>) attributes {dimension_semantics = [#tpu.dimension_semantics<parallel>], iteration_bounds = array<i64: 1>, scalar_prefetch = 0 : i64, scratch_operands = 0 : i64, tpu.core_type = #tpu.core_type<tc>, window_params = [{pipeline_mode = #tpu.pipeline_mode<synchronous>, transform_indices = @transform_0, window_bounds = array<i64: 1, 2048>}, {pipeline_mode = #tpu.pipeline_mode<synchronous>, transform_indices = @transform_1, window_bounds = array<i64: 1, 2048>}]} {
    %c0 = arith.constant 0 : index
    %c0_0 = arith.constant 0 : index
    %0 = vector.load %arg1[%c0, %c0_0] : memref<1x2048xf32, #tpu.memory_space<vmem>>, vector<1x2048xf32>
    %c0_1 = arith.constant 0 : index
    %c0_2 = arith.constant 0 : index
    %1 = vector.load %arg2[%c0_1, %c0_2] : memref<1x2048xf32, #tpu.memory_space<vmem>>, vector<1x2048xf32>
    tpu.vector_store %arg2[%c0_1, %c0_2], %0 {strides = array<i32>} : memref<1x2048xf32, #tpu.memory_space<vmem>>, vector<1x2048xf32>,
    return
  }
  func.func @transform_0(%arg0: i32) -> (i32, i32) {
    %c0_i32 = arith.constant 0 : i32
    %c0_i32_0 = arith.constant 0 : i32
    %c0_i32_1 = arith.constant 0 : i32
    return %c0_i32, %c0_i32_0 : i32, i32
  }
  func.func @transform_1(%arg0: i32) -> (i32, i32) {
    %c0_i32 = arith.constant 0 : i32
    %c0_i32_0 = arith.constant 0 : i32
    %c0_i32_1 = arith.constant 0 : i32
    return %c0_i32, %c0_i32_0 : i32, i32
  }
}

</mosaic_0001>

<llo_original>
// kernel: tpu_custom_call.1
$region0: #{tpu_custom_call.1}
  #allocation0 [shape = 'u32[]', space=smem, size = 0x4, offset = 0x4, fixed_abs, tag = 'smem constant byte address 0x4 - core index']
  #allocation1 [shape = 'u32[144,128]{1,0:T(1,128)}', space=vmem, size = 0x12000, scoped, tag = 'internal scratch']
  %s0 = inlined_call_operand.hbm [shape: f32[1,2048], index: 0, kind: input, shape index: {}, may-alias: {0,1}]
  %s1 = inlined_call_operand.hbm [shape: f32[1,2048], index: 1, kind: output, shape index: {}, may-alias: {0,1}]
  %s2 = sld [smem:[#allocation0]]
  $region18: #{tpu_custom_call.1} parent=0
    _
  %s4 = ssub.s32 1, %s2
  %s5 = scalar_select 0, %s4, %s2
  $region1: #{tpu_custom_call.1} parent=0
    #allocation2 [shape = 'u8[8192]{0}', space=vmem, size = 0x2000, scoped, tag = 'input window, operand 0, single buffered']
    #allocation3 [shape = 's32[1]{0}', space=sflag, size = 0x4, scoped, tag = 'scoped memory for tpu_custom_call.1']
    #allocation4 [shape = 's32[1]{0}', space=sflag, size = 0x4, scoped, tag = 'scoped memory for tpu_custom_call.1']
    #allocation5 [shape = 'u8[8192]{0}', space=vmem, size = 0x2000, scoped, tag = 'output window, operand 0, single buffered']
    %6 = vsyncpa [#allocation3], 0
    %7 = vsyncpa [#allocation4], 0
    // Predicated region
    $region2: #{tpu_custom_call.1} parent=1 // pred_check
      _
    $region3: #{tpu_custom_call.1} parent=1 // pred_check_branch
      %9 = sbr.rel (0) target = $region5
    $region4: #{tpu_custom_call.1} parent=1 // pred_region
      %s11 = ssub.s32 256, 256
      %12 = vsyncadd [#allocation3], %s11
      %s14 = sshll.u32 [#allocation2], 4
      %s15 = int_to_ptr.vmem [resolvable:$true] %s14
      %17 = dma.hbm_to_vmem [thread:$0]  %s0, 256, %s15, [#allocation3]
    $region5: #{tpu_custom_call.1} parent=1 // pred_fallthru
      _
    // Predicated region
    $region6: #{tpu_custom_call.1} parent=1 // pred_check
      _
    $region7: #{tpu_custom_call.1} parent=1 // pred_check_branch
      %19 = sbr.rel (0) target = $region9
    $region8: #{tpu_custom_call.1} parent=1 // pred_region
      %20 = dma.done [#allocation3], 256
    $region9: #{tpu_custom_call.1} parent=1 // pred_fallthru
      _
    %v21 = vld [vmem:[#allocation2] sm:$0xff]
    %v22 = vld [vmem:[#allocation2 + $0x8] sm:$0xff]
    %23 = vst [vmem:[#allocation5] sm:$0xff] %v21
    %24 = vst [vmem:[#allocation5 + $0x8] sm:$0xff] %v22
    // Predicated region
    $region10: #{tpu_custom_call.1} parent=1 // pred_check
      _
    $region11: #{tpu_custom_call.1} parent=1 // pred_check_branch
      %26 = sbr.rel (0) target = $region13
    $region12: #{tpu_custom_call.1} parent=1 // pred_region
      %s28 = ssub.s32 256, 256
      %29 = vsyncadd [#allocation4], %s28
      %s31 = sshll.u32 [#allocation5], 4
      %s32 = int_to_ptr.vmem [resolvable:$true] %s31
      %34 = dma.vmem_to_hbm [thread:$0]  %s32, 256, %s1, [#allocation4]
    $region13: #{tpu_custom_call.1} parent=1 // pred_fallthru
      _
    // Predicated region
    $region14: #{tpu_custom_call.1} parent=1 // pred_check
      _
    $region15: #{tpu_custom_call.1} parent=1 // pred_check_branch
      %36 = sbr.rel (0) target = $region17
    $region16: #{tpu_custom_call.1} parent=1 // pred_region
      %37 = dma.done [#allocation4], 256
    $region17: #{tpu_custom_call.1} parent=1 // pred_fallthru
      _
    %38 = vsyncpa [#allocation3], 1
    %39 = vsyncpa [#allocation4], 1

</llo_original>
